<compile_context>
chip_gen: v6e
topology: v6e:2x2x1
jax: 0.10.0
libtpu: 0.0.40
codegen_flags: <defaults>
</compile_context>

<pallas_src>
import jax
import jax.numpy as jnp
from jax.experimental import pallas as pl
from jax.experimental.pallas import tpu as pltpu


def gated_model_kernel(x_ref, p_ref, o_ref):
    # x_ref : (TM, 1)   p_ref : (2, 8)  [row 0 = w_eff, row 1 = b_eff]
    # o_ref : (TM, 8)
    x = x_ref[...]                       # (TM, 1)
    w = p_ref[0:1, :]                    # (1, 8)
    b = p_ref[1:2, :]                    # (1, 8)
    y = x * w + b                        # broadcast outer product: pure VPU
    o_ref[...] = (y * jax.nn.sigmoid(y)).astype(o_ref.dtype)   # sigmoid -> EUP


def gated_model(x, w1, b1, w2, b2, *, tm=2048):
    """x: (B, 1); w1: (1,1); b1: (1,1); w2: (1,8); b2: (1,8) -> (B, 8)."""
    B = x.shape[0]
    N = w2.shape[1]

    # Fold Linear(1,1) into Linear(1,8): exact in fp32 up to rounding order.
    w_eff = w1[0, 0] * w2                # (1, N)
    b_eff = b1[0, 0] * w2 + b2           # (1, N)
    params = jnp.concatenate([w_eff, b_eff], axis=0)  # (2, N) -> one DMA

    # Batch tiling: single full block for small B, 8-aligned tiles otherwise.
    if B <= tm:
        tm_eff = B
        x_pad = x
    else:
        tm_eff = tm                      # multiple of 8 (sublane constraint)
        Bp = pl.cdiv(B, tm_eff) * tm_eff
        x_pad = jnp.pad(x, ((0, Bp - B), (0, 0)))
    Bp = x_pad.shape[0]
    grid = (Bp // tm_eff,)

    out = pl.pallas_call(
        gated_model_kernel,
        out_shape=jax.ShapeDtypeStruct((Bp, N), jnp.float32),
        grid=grid,
        in_specs=[
            pl.BlockSpec((tm_eff, 1), lambda i: (i, 0)),
            pl.BlockSpec((2, N), lambda i: (0, 0)),
        ],
        out_specs=pl.BlockSpec((tm_eff, N), lambda i: (i, 0)),
        compiler_params=pltpu.CompilerParams(
            dimension_semantics=("parallel",),
        ),
        cost_estimate=pl.CostEstimate(
            flops=4 * Bp * N,
            transcendentals=Bp * N,
            bytes_accessed=4 * (Bp * 1 + 2 * N + Bp * N),
        ),
    )(x_pad, params)
    return out[:B]


def reference(x, w1, b1, w2, b2):
    y1 = x @ w1 + b1
    y2 = y1 @ w2 + b2
    return y2 * jax.nn.sigmoid(y2)


if __name__ == "__main__":
    key = jax.random.PRNGKey(0)
    k_x, k_w1, k_b1, k_w2, k_b2 = jax.random.split(key, 5)

    B = 2  # small batch; PyTorch example uses (1, 1), feature dim stays 1
    x = jax.random.normal(k_x, (B, 1), dtype=jnp.float32)

    # Deterministic "init" of the two Linear layers (pre-transposed weights).
    w1 = jax.random.normal(k_w1, (1, 1), dtype=jnp.float32) * 0.5   # Linear(1,1).weight.T
    b1 = jax.random.normal(k_b1, (1, 1), dtype=jnp.float32) * 0.1   # Linear(1,1).bias
    w2 = jax.random.normal(k_w2, (1, 8), dtype=jnp.float32) * 0.5   # Linear(1,8).weight.T
    b2 = jax.random.normal(k_b2, (1, 8), dtype=jnp.float32) * 0.1   # Linear(1,8).bias

    out = gated_model(x, w1, b1, w2, b2)
    out = jax.block_until_ready(out)

    ref = reference(x, w1, b1, w2, b2)
    assert out.shape == (B, 8)
    assert jnp.allclose(out, ref, atol=1e-5, rtol=1e-5)

    print("KERNEL_OK")
</pallas_src>

<mosaic_0001>
module attributes {stable_mosaic.version = 11 : i64} {
  func.func @gated_model_kernel(%arg0: i32, %arg1: memref<2x1xf32, #tpu.memory_space<vmem>>, %arg2: memref<2x8xf32, #tpu.memory_space<vmem>>, %arg3: memref<2x8xf32, #tpu.memory_space<vmem>>) attributes {dimension_semantics = [#tpu.dimension_semantics<parallel>], iteration_bounds = array<i64: 1>, scalar_prefetch = 0 : i64, scratch_operands = 0 : i64, tpu.core_type = #tpu.core_type<tc>, window_params = [{transform_indices = @transform_0, window_bounds = array<i64: 2, 1>}, {pipeline_mode = #tpu.pipeline_mode<synchronous>, transform_indices = @transform_1, window_bounds = array<i64: 2, 8>}, {transform_indices = @transform_2, window_bounds = array<i64: 2, 8>}]} {
    %c0 = arith.constant 0 : index
    %c0_0 = arith.constant 0 : index
    %0 = vector.load %arg1[%c0, %c0_0] : memref<2x1xf32, #tpu.memory_space<vmem>>, vector<2x1xf32>
    %c0_1 = arith.constant 0 : index
    %c0_2 = arith.constant 0 : index
    %1 = vector.load %arg2[%c0_1, %c0_2] : memref<2x8xf32, #tpu.memory_space<vmem>>, vector<1x8xf32>
    %c1 = arith.constant 1 : index
    %c0_3 = arith.constant 0 : index
    %2 = vector.load %arg2[%c1, %c0_3] : memref<2x8xf32, #tpu.memory_space<vmem>>, vector<1x8xf32>
    %3 = vector.broadcast %0 : vector<2x1xf32> to vector<2x8xf32>
    %4 = vector.broadcast %1 : vector<1x8xf32> to vector<2x8xf32>
    %5 = arith.mulf %3, %4 : vector<2x8xf32>
    %6 = vector.broadcast %2 : vector<1x8xf32> to vector<2x8xf32>
    %7 = arith.addf %5, %6 : vector<2x8xf32>
    %8 = arith.negf %7 : vector<2x8xf32>
    %9 = math.exp %8 : vector<2x8xf32>
    %cst = arith.constant 1.000000e+00 : f32
    %10 = vector.broadcast %cst : f32 to vector<2x8xf32>
    %11 = arith.addf %10, %9 : vector<2x8xf32>
    %12 = arith.divf %10, %11 : vector<2x8xf32>
    %13 = arith.mulf %7, %12 : vector<2x8xf32>
    %c0_4 = arith.constant 0 : index
    %c0_5 = arith.constant 0 : index
    %14 = vector.load %arg3[%c0_4, %c0_5] : memref<2x8xf32, #tpu.memory_space<vmem>>, vector<2x8xf32>
    tpu.vector_store %arg3[%c0_4, %c0_5], %13 {strides = array<i32>} : memref<2x8xf32, #tpu.memory_space<vmem>>, vector<2x8xf32>,
    return
  }
  func.func @transform_0(%arg0: i32) -> (i32, i32) {
    %c0_i32 = arith.constant 0 : i32
    %c0_i32_0 = arith.constant 0 : i32
    return %arg0, %c0_i32 : i32, i32
  }
  func.func @transform_1(%arg0: i32) -> (i32, i32) {
    %c0_i32 = arith.constant 0 : i32
    %c0_i32_0 = arith.constant 0 : i32
    %c0_i32_1 = arith.constant 0 : i32
    return %c0_i32, %c0_i32_0 : i32, i32
  }
  func.func @transform_2(%arg0: i32) -> (i32, i32) {
    %c0_i32 = arith.constant 0 : i32
    %c0_i32_0 = arith.constant 0 : i32
    return %arg0, %c0_i32 : i32, i32
  }
}

</mosaic_0001>

<llo_original>
// kernel: tpu_custom_call.1
$region0: #{tpu_custom_call.1}
  #allocation0 [shape = 'u32[]', space=smem, size = 0x4, offset = 0x4, fixed_abs, tag = 'smem constant byte address 0x4 - core index']
  #allocation1 [shape = 'u32[144,128]{1,0:T(1,128)}', space=vmem, size = 0x12000, scoped, tag = 'internal scratch']
  %s0 = inlined_call_operand.vmem [shape: f32[2,1], index: 0, kind: input, shape index: {}]
  %s1 = inlined_call_operand.vmem [shape: f32[2,8], index: 1, kind: input, shape index: {}]
  %s2 = inlined_call_operand.hbm [shape: f32[2,8], index: 2, kind: output, shape index: {}]
  %s3 = sld [smem:[#allocation0]]
  $region18: #{tpu_custom_call.1} parent=0
    _
  %s5 = ssub.s32 1, %s3
  %s6 = scalar_select 0, %s5, %s3
  $region1: #{tpu_custom_call.1} parent=0
    #allocation2 [shape = 'u8[1024]{0}', space=vmem, size = 0x400, scoped, tag = 'output window, operand 0, single buffered']
    #allocation3 [shape = 's32[1]{0}', space=sflag, size = 0x4, scoped, tag = 'scoped memory for tpu_custom_call.1']
    %7 = vsyncpa [#allocation3], 0
    // Predicated region
    $region2: #{tpu_custom_call.1} parent=1 // pred_check
      _
    $region3: #{tpu_custom_call.1} parent=1 // pred_check_branch
      %9 = sbr.rel (0) target = $region5
    $region4: #{tpu_custom_call.1} parent=1 // pred_region
      _
    $region5: #{tpu_custom_call.1} parent=1 // pred_fallthru
      _
    // Predicated region
    $region6: #{tpu_custom_call.1} parent=1 // pred_check
      _
    $region7: #{tpu_custom_call.1} parent=1 // pred_check_branch
      %11 = sbr.rel (0) target = $region9
    $region8: #{tpu_custom_call.1} parent=1 // pred_region
      _
    $region9: #{tpu_custom_call.1} parent=1 // pred_fallthru
      _
    %v12 = vld [vmem:[%s0] sm:$0x3]
    %v13 = vld [vmem:[%s1] sm:$0x1]
    %v14 = vld [vmem:[%s1 + $0x1] sm:$0x1]
    %16 = vset.pattern.permute.xlu0 0
    %17 = vperm.xlu0 %16, %v12
    %v18 = vpop.permute.xlu0 %17
    %v20 = vlaneseq
    %v21 = vshrl.u32 %v20, 7
    %v22 = vsub.s32 0, %v21
    %v23 = vrot.slane %v13, %v22
    %v24 = vmul.f32 %v18, %v23
    %v25 = vlaneseq
    %v26 = vshrl.u32 %v25, 7
    %v27 = vsub.s32 0, %v26
    %v28 = vrot.slane %v14, %v27
    %v29 = vadd.f32 %v24, %v28
    %v30 = vxor.u32 %v29, 2147483648
    %v31 = vmul.f32 %v30, 1.442695
    %v32 = vpow.pop %v31
    %v33 = vadd.f32 %v32, 1.0
    %v34 = vrcp.pop %v33
    %v35 = vmul.f32 1.0, %v34
    %v36 = vmul.f32 %v29, %v35
    %vm37 = vcmask 58368
    %38 = vst.msk [vmem:[#allocation2] sm:$0x3] %vm37, %v36
    // Predicated region
    $region10: #{tpu_custom_call.1} parent=1 // pred_check
      _
    $region11: #{tpu_custom_call.1} parent=1 // pred_check_branch
      %40 = sbr.rel (0) target = $region13
    $region12: #{tpu_custom_call.1} parent=1 // pred_region
      %s42 = ssub.s32 32, 32
      %43 = vsyncadd [#allocation3], %s42
      %s45 = sshll.u32 [#allocation2], 4
      %s46 = int_to_ptr.vmem [resolvable:$true] %s45
      %48 = dma.vmem_to_hbm [thread:$0]  %s46, 32, %s2, [#allocation3]
    $region13: #{tpu_custom_call.1} parent=1 // pred_fallthru
      _
    // Predicated region
    $region14: #{tpu_custom_call.1} parent=1 // pred_check
      _
    $region15: #{tpu_custom_call.1} parent=1 // pred_check_branch
      %50 = sbr.rel (0) target = $region17
    $region16: #{tpu_custom_call.1} parent=1 // pred_region
      %51 = dma.done [#allocation3], 32
    $region17: #{tpu_custom_call.1} parent=1 // pred_fallthru
      _
    %52 = vsyncpa [#allocation3], 1

</llo_original>
